<compile_context>
chip_gen: v7x
topology: tpu7x:2x2x1
jax: 0.10.0
libtpu: 0.0.40
codegen_flags: <defaults>
</compile_context>

<pallas_src>
import jax
import jax.numpy as jnp
from jax.experimental import pallas as pl
from jax.experimental.pallas import tpu as pltpu

LANES = 128
_TARGET_BLOCK_BYTES = 4 * 1024 * 1024  # ~4 MiB per block (x2 buffers x in/out = 16 MiB)


def _sublanes_for(dtype):
    # Minimum sublane packing: 8 for 4-byte, 16 for 2-byte, 32 for 1-byte dtypes.
    itemsize = jnp.dtype(dtype).itemsize
    return max(8, 32 // itemsize)


def _block_rows_for(dtype):
    return _TARGET_BLOCK_BYTES // (LANES * jnp.dtype(dtype).itemsize)


def _swish_kernel(beta_ref, x_ref, o_ref):
    # beta_ref: (1,) f32 scalar in SMEM; x_ref/o_ref: (block_rows, 128) VMEM
    # tiles in the caller's native dtype.
    beta = beta_ref[0]
    x = x_ref[...].astype(jnp.float32)            # in-kernel upcast (free vs HBM pass)
    z = beta * x
    # Exact, overflow-safe sigmoid; single EUP (tanh) push per element.
    sig = 0.5 * (1.0 + jnp.tanh(0.5 * z))
    o_ref[...] = (x * sig).astype(o_ref.dtype)


def _swish_jnp(x, beta_f32):
    # Pure-jnp path for the (tiny) unaligned tail / degenerate sizes.
    # Same formulation as the kernel for numerical parity.
    xf = x.astype(jnp.float32)
    sig = 0.5 * (1.0 + jnp.tanh(0.5 * beta_f32 * xf))
    return (xf * sig).astype(x.dtype)


def swish(x, beta, *, block_rows=None):
    """Applies x * sigmoid(beta * x) elementwise via a Pallas TPU kernel.

    x: any shape, floating dtype (f32 / bf16 / f16).  beta: scalar parameter.
    """
    orig_shape = x.shape
    orig_dtype = x.dtype
    sub = _sublanes_for(orig_dtype)
    if block_rows is None:
        block_rows = _block_rows_for(orig_dtype)

    flat = x.reshape(-1)                         # reshape of contiguous array is free
    n = flat.shape[0]

    beta_f32 = jnp.asarray(beta, dtype=jnp.float32).reshape(())

    chunk = sub * LANES                          # one fully-packed vreg row of elements
    bulk_n = (n // chunk) * chunk                # kernel handles this aligned prefix

    if bulk_n == 0:
        # Everything fits in less than one packed vreg row: not worth a kernel launch.
        return _swish_jnp(flat, beta_f32).reshape(orig_shape)

    bulk = flat[:bulk_n]
    rows = bulk_n // LANES                       # multiple of `sub` by construction
    block_rows = max(sub, (min(block_rows, rows) // sub) * sub)
    x2d = bulk.reshape(rows, LANES)              # lane-dense (rows, 128) slab

    beta_arr = beta_f32.reshape(1)

    grid = (pl.cdiv(rows, block_rows),)          # ragged last block handled by Pallas
    bulk_out = pl.pallas_call(
        _swish_kernel,
        out_shape=jax.ShapeDtypeStruct((rows, LANES), orig_dtype),
        grid=grid,
        in_specs=[
            pl.BlockSpec(memory_space=pltpu.MemorySpace.SMEM),     # beta scalar
            pl.BlockSpec((block_rows, LANES), lambda i: (i, 0)),   # x tile
        ],
        out_specs=pl.BlockSpec((block_rows, LANES), lambda i: (i, 0)),
        compiler_params=pltpu.CompilerParams(
            dimension_semantics=("parallel",),
            vmem_limit_bytes=32 * 1024 * 1024,   # covers big blocks on v5e's 16 MiB default
        ),
    )(beta_arr, x2d)

    if bulk_n == n:
        return bulk_out.reshape(orig_shape)

    # Small unaligned tail (< sub*128 elements) computed in plain jnp; single
    # concatenate copy instead of pad(read+write) + slice(read+write) passes.
    tail_out = _swish_jnp(flat[bulk_n:], beta_f32)
    return jnp.concatenate([bulk_out.reshape(-1), tail_out]).reshape(orig_shape)


if __name__ == "__main__":
    key = jax.random.PRNGKey(0)

    # Deterministic parameter init, matching nn.Parameter(torch.tensor(1.0)).
    beta = jnp.float32(1.0)

    ok = True

    # Case 1: typical NCHW activation, f32, fully aligned (exercises kernel-only path).
    x = jax.random.normal(key, (2, 4, 16, 16), dtype=jnp.float32)
    y = jax.block_until_ready(swish(x, beta))
    ref = x * jax.nn.sigmoid(beta * x)
    ok &= y.shape == x.shape and y.dtype == x.dtype
    ok &= bool(jnp.allclose(y, ref, atol=1e-5, rtol=1e-5))

    # Case 2: bf16 input (native-dtype HBM streaming, 16-row sublane alignment).
    xb = x.astype(jnp.bfloat16)
    yb = jax.block_until_ready(swish(xb, beta))
    refb = (xb.astype(jnp.float32) * jax.nn.sigmoid(beta * xb.astype(jnp.float32))
            ).astype(jnp.bfloat16)
    ok &= yb.shape == xb.shape and yb.dtype == xb.dtype
    ok &= bool(jnp.allclose(yb.astype(jnp.float32), refb.astype(jnp.float32),
                            atol=2e-2, rtol=2e-2))

    # Case 3: unaligned size (exercises bulk-kernel + jnp-tail path).
    xu = jax.random.normal(jax.random.PRNGKey(1), (5, 250), dtype=jnp.float32)
    yu = jax.block_until_ready(swish(xu, beta))
    refu = xu * jax.nn.sigmoid(beta * xu)
    ok &= yu.shape == xu.shape and yu.dtype == xu.dtype
    ok &= bool(jnp.allclose(yu, refu, atol=1e-5, rtol=1e-5))

    assert ok
    print("KERNEL_OK")
</pallas_src>

<mosaic_0001>
module attributes {stable_mosaic.version = 11 : i64} {
  func.func @_swish_kernel(%arg0: i32, %arg1: memref<1xf32, #tpu.memory_space<smem>>, %arg2: memref<16x128xf32, #tpu.memory_space<vmem>>, %arg3: memref<16x128xf32, #tpu.memory_space<vmem>>) attributes {dimension_semantics = [#tpu.dimension_semantics<parallel>], iteration_bounds = array<i64: 1>, scalar_prefetch = 0 : i64, scratch_operands = 0 : i64, tpu.core_type = #tpu.core_type<tc>, window_params = [{transform_indices = @transform_0, window_bounds = array<i64: 1>}, {transform_indices = @transform_1, window_bounds = array<i64: 16, 128>}, {transform_indices = @transform_2, window_bounds = array<i64: 16, 128>}]} {
    %c0 = arith.constant 0 : index
    %0 = memref.load %arg1[%c0] : memref<1xf32, #tpu.memory_space<smem>>
    %c0_0 = arith.constant 0 : index
    %c0_1 = arith.constant 0 : index
    %1 = vector.load %arg2[%c0_0, %c0_1] : memref<16x128xf32, #tpu.memory_space<vmem>>, vector<16x128xf32>
    %2 = vector.broadcast %0 : f32 to vector<16x128xf32>
    %3 = arith.mulf %2, %1 : vector<16x128xf32>
    %cst = arith.constant 5.000000e-01 : f32
    %4 = vector.broadcast %cst : f32 to vector<16x128xf32>
    %5 = arith.mulf %4, %3 : vector<16x128xf32>
    %6 = math.tanh %5 : vector<16x128xf32>
    %cst_2 = arith.constant 1.000000e+00 : f32
    %7 = vector.broadcast %cst_2 : f32 to vector<16x128xf32>
    %8 = arith.addf %7, %6 : vector<16x128xf32>
    %cst_3 = arith.constant 5.000000e-01 : f32
    %9 = vector.broadcast %cst_3 : f32 to vector<16x128xf32>
    %10 = arith.mulf %9, %8 : vector<16x128xf32>
    %11 = arith.mulf %1, %10 : vector<16x128xf32>
    %c0_4 = arith.constant 0 : index
    %c0_5 = arith.constant 0 : index
    %12 = vector.load %arg3[%c0_4, %c0_5] : memref<16x128xf32, #tpu.memory_space<vmem>>, vector<16x128xf32>
    tpu.vector_store %arg3[%c0_4, %c0_5], %11 {strides = array<i32>} : memref<16x128xf32, #tpu.memory_space<vmem>>, vector<16x128xf32>,
    return
  }
  func.func @transform_0(%arg0: i32) -> i32 {
    %c0_i32 = arith.constant 0 : i32
    %c0_i32_0 = arith.constant 0 : i32
    return %c0_i32 : i32
  }
  func.func @transform_1(%arg0: i32) -> (i32, i32) {
    %c0_i32 = arith.constant 0 : i32
    %c0_i32_0 = arith.constant 0 : i32
    return %arg0, %c0_i32 : i32, i32
  }
  func.func @transform_2(%arg0: i32) -> (i32, i32) {
    %c0_i32 = arith.constant 0 : i32
    %c0_i32_0 = arith.constant 0 : i32
    return %arg0, %c0_i32 : i32, i32
  }
}

</mosaic_0001>

<llo_original>
// kernel: tpu_custom_call.1
$region0: #{tpu_custom_call.1}
  #allocation0 [shape = 'u32[]', space=smem, size = 0x4, offset = 0x4, fixed_abs, tag = 'smem constant byte address 0x4 - core index']
  #allocation1 [shape = 'u32[144,128]{1,0:T(1,128)}', space=vmem, size = 0x12000, scoped, tag = 'internal scratch']
  #allocation2 [shape = 'f32[1]{0:T(128)S(6)}', space=smem, size = 0x200, scoped, tag = 'scoped memory for tpu_custom_call.1']
  %s0 = inlined_call_operand.<no memory space> [shape: f32[1], index: 0, kind: input, shape index: {}]
  %s1 = inlined_call_operand.hbm [shape: f32[16,128], index: 1, kind: input, shape index: {}]
  %s2 = inlined_call_operand.hbm [shape: f32[16,128], index: 2, kind: output, shape index: {}]
  %s3 = sld [smem:[#allocation0]]
  $region22: #{tpu_custom_call.1} parent=0
    _
  %s5 = ssub.s32 1, %s3
  %s6 = scalar_select 0, %s5, %s3
  %7 = sst [smem:[#allocation2]] %s0
  $region1: #{tpu_custom_call.1} parent=0
    #allocation3 [shape = 'u8[8192]{0}', space=vmem, size = 0x2000, scoped, tag = 'input window, operand 1, single buffered']
    #allocation4 [shape = 's32[1]{0}', space=sflag, size = 0x4, scoped, tag = 'scoped memory for tpu_custom_call.1']
    #allocation5 [shape = 's32[1]{0}', space=sflag, size = 0x4, scoped, tag = 'scoped memory for tpu_custom_call.1']
    #allocation6 [shape = 'u8[8192]{0}', space=vmem, size = 0x2000, scoped, tag = 'output window, operand 0, single buffered']
    %8 = vsyncpa [#allocation4], 0
    %9 = vsyncpa [#allocation5], 0
    // Predicated region
    $region2: #{tpu_custom_call.1} parent=1 // pred_check
      _
    $region3: #{tpu_custom_call.1} parent=1 // pred_check_branch
      %11 = sbr.rel (0) target = $region5
    $region4: #{tpu_custom_call.1} parent=1 // pred_region
      _
    $region5: #{tpu_custom_call.1} parent=1 // pred_fallthru
      _
    // Predicated region
    $region6: #{tpu_custom_call.1} parent=1 // pred_check
      _
    $region7: #{tpu_custom_call.1} parent=1 // pred_check_branch
      %13 = sbr.rel (0) target = $region9
    $region8: #{tpu_custom_call.1} parent=1 // pred_region
      %s15 = ssub.s32 256, 256
      %16 = vsyncadd [#allocation4], %s15
      %s17 = sshll.u32 [#allocation3], 4
      %s18 = int_to_ptr.vmem [resolvable:$true] %s17
      %23 = dma.hbm_to_vmem [thread:$0]  %s1, 256, %s18, [#allocation4], 128, 128, 8
    $region9: #{tpu_custom_call.1} parent=1 // pred_fallthru
      _
    // Predicated region
    $region10: #{tpu_custom_call.1} parent=1 // pred_check
      _
    $region11: #{tpu_custom_call.1} parent=1 // pred_check_branch
      %25 = sbr.rel (0) target = $region13
    $region12: #{tpu_custom_call.1} parent=1 // pred_region
      %26 = dma.done [#allocation4], 256
    $region13: #{tpu_custom_call.1} parent=1 // pred_fallthru
      _
    %s27 = sld [smem:[#allocation2]]
    %v28 = vld [vmem:[#allocation3] sm:$0xff]
    %v29 = vld [vmem:[#allocation3 + $0x8] sm:$0xff]
    %v30 = vstv %s27
    %v31 = vmul.f32 %v30, %v28
    %v32 = vmul.f32 %v30, %v29
    %v33 = vmul.f32 %v31, 0.5
    %v34 = vmul.f32 %v32, 0.5
    %v35 = vtanh.pop %v33
    %v36 = vtanh.pop %v34
    %v37 = vadd.f32 %v35, 1.0
    %v38 = vadd.f32 %v36, 1.0
    %v39 = vmul.f32 %v37, 0.5
    %v40 = vmul.f32 %v38, 0.5
    %v41 = vmul.f32 %v28, %v39
    %v42 = vmul.f32 %v29, %v40
    %43 = vst [vmem:[#allocation6] sm:$0xff] %v41
    %44 = vst [vmem:[#allocation6 + $0x8] sm:$0xff] %v42
    // Predicated region
    $region14: #{tpu_custom_call.1} parent=1 // pred_check
      _
    $region15: #{tpu_custom_call.1} parent=1 // pred_check_branch
      %46 = sbr.rel (0) target = $region17
    $region16: #{tpu_custom_call.1} parent=1 // pred_region
      %s48 = ssub.s32 256, 256
      %49 = vsyncadd [#allocation5], %s48
      %s50 = sshll.u32 [#allocation6], 4
      %s51 = int_to_ptr.vmem [resolvable:$true] %s50
      %56 = dma.vmem_to_hbm [thread:$0]  %s51, 256, %s2, [#allocation5], 128, 128, 8
    $region17: #{tpu_custom_call.1} parent=1 // pred_fallthru
      _
    // Predicated region
    $region18: #{tpu_custom_call.1} parent=1 // pred_check
      _
    $region19: #{tpu_custom_call.1} parent=1 // pred_check_branch
      %58 = sbr.rel (0) target = $region21
    $region20: #{tpu_custom_call.1} parent=1 // pred_region
      %59 = dma.done [#allocation5], 256
    $region21: #{tpu_custom_call.1} parent=1 // pred_fallthru
      _
    %60 = vsyncpa [#allocation4], 1
    %61 = vsyncpa [#allocation5], 1

</llo_original>
